<compile_context>
chip_gen: v7x
topology: tpu7x:2x2x1
jax: 0.10.0
libtpu: 0.0.40
codegen_flags: <defaults>
</compile_context>

<pallas_src>
import functools

import jax
import jax.numpy as jnp
from jax.experimental import pallas as pl
from jax.experimental.pallas import tpu as pltpu

LANE = 128     # TPU lane width: feature (last-dim) padding target
SUBLANE = 8    # TPU sublane width: batch (second-last dim) padding target


def _gelu(x):
    # exact (erf-based) GELU, matching torch.nn.GELU(approximate='none')
    return 0.5 * x * (1.0 + jax.lax.erf(x * 0.7071067811865476))


def _round_up(v, m):
    return (v + m - 1) // m * m


def _pad_to(a, shape):
    pads = [(0, t - s) for s, t in zip(a.shape, shape)]
    if all(p == (0, 0) for p in pads):
        return a
    return jnp.pad(a, pads)


def mlp_kernel(x_ref, w_pre_ref, b_pre_ref, gamma_ref, beta_ref,
               w_out_ref, b_out_ref, o_ref, *, num_layers, eps, n_valid):
    x = x_ref[...]                                            # (Np, Din_p)

    # linear_pre + GELU
    h = _gelu(jnp.dot(x, w_pre_ref[...],
                      preferred_element_type=jnp.float32) + b_pre_ref[...])

    # Mask for zero-padded batch rows (static check; no-op when N % 8 == 0).
    n_pad = h.shape[0]
    mask = None
    if n_pad != n_valid:
        row = jax.lax.broadcasted_iota(jnp.int32, h.shape, 0)
        mask = row < n_valid

    inv_n = 1.0 / n_valid

    # Residual BatchNorm blocks.
    # NOTE: in the reference forward, `self.linears[i](x)` is computed and then
    # immediately overwritten by the batch-norm result, so it never affects the
    # output; that dead linear layer is intentionally not computed here.
    for i in range(num_layers):
        if mask is not None:
            h = jnp.where(mask, h, 0.0)                       # keep BN sums valid-only
        # one-pass batch statistics: single sweep over the batch (sublane) axis
        s1 = jnp.sum(h, axis=0, keepdims=True)                # (1, H)
        s2 = jnp.sum(h * h, axis=0, keepdims=True)            # (1, H)
        mean = s1 * inv_n
        var = s2 * inv_n - mean * mean                        # biased, as in BN training fwd
        gamma = gamma_ref[i:i + 1, :]                         # static slice (1, H)
        beta = beta_ref[i:i + 1, :]
        scale = jax.lax.rsqrt(var + eps) * gamma
        shift = beta - mean * scale
        h = _gelu(h * scale + shift) + h                      # isResNet=True residual

    # linear_out
    out = jnp.dot(h, w_out_ref[...],
                  preferred_element_type=jnp.float32) + b_out_ref[...]
    o_ref[...] = out.astype(o_ref.dtype)


def mlp_forward(x, w_pre, b_pre, gamma, beta, w_out, b_out,
                *, num_layers=1, eps=1e-5):
    n, num_input = x.shape
    num_hidden = w_pre.shape[1]
    num_output = w_out.shape[1]

    # Lane/sublane-dense padding (zeros; semantics preserved, see kernel notes).
    n_pad = _round_up(n, SUBLANE)
    d_in = _round_up(num_input, LANE)
    d_hid = _round_up(num_hidden, LANE)
    d_out = _round_up(num_output, LANE)

    x_p = _pad_to(x, (n_pad, d_in))
    w_pre_p = _pad_to(w_pre, (d_in, d_hid))
    b_pre_p = _pad_to(b_pre, (1, d_hid))
    gamma_p = _pad_to(gamma, (num_layers, d_hid))
    beta_p = _pad_to(beta, (num_layers, d_hid))
    w_out_p = _pad_to(w_out, (d_hid, d_out))
    b_out_p = _pad_to(b_out, (1, d_out))

    kernel = functools.partial(mlp_kernel, num_layers=num_layers, eps=eps,
                               n_valid=n)
    vmem = pl.BlockSpec(memory_space=pltpu.MemorySpace.VMEM)

    out_p = pl.pallas_call(
        kernel,
        out_shape=jax.ShapeDtypeStruct((n_pad, d_out), jnp.float32),
        in_specs=[vmem] * 7,
        out_specs=vmem,
        # Whole problem lives in a single whole-array VMEM block; no grid needed
        # at these sizes (launch-overhead bound).
        # TODO(synk): when scaling up, add a grid over the hidden/feature axis
        # with dimension_semantics=("parallel",) (BN batch stats stay local to
        # each feature tile) and budget tiles against 64 MiB VMEM on v7x via
        # pltpu.CompilerParams(vmem_limit_bytes).
    )(x_p, w_pre_p, b_pre_p, gamma_p, beta_p, w_out_p, b_out_p)

    return out_p[:n, :num_output]


def mlp_reference(x, w_pre, b_pre, gamma, beta, w_out, b_out,
                  *, num_layers=1, eps=1e-5):
    h = _gelu(x @ w_pre + b_pre)
    for i in range(num_layers):
        mean = jnp.mean(h, axis=0, keepdims=True)
        var = jnp.mean((h - mean) ** 2, axis=0, keepdims=True)
        bn = (h - mean) / jnp.sqrt(var + eps) * gamma[i:i + 1] + beta[i:i + 1]
        h = _gelu(bn) + h
    return h @ w_out + b_out


if __name__ == "__main__":
    # Small, deterministic problem: batch=8, num_input=4, num_hidden=32, num_output=4
    N, num_input, num_hidden, num_output, num_layers = 8, 4, 32, 4, 1

    key = jax.random.PRNGKey(0)
    k_x, k_wp, k_bp, k_wo, k_bo = jax.random.split(key, 5)

    x = jax.random.normal(k_x, (N, num_input), jnp.float32)
    # PyTorch nn.Linear weights are (out,in); stored pre-transposed as (in,out).
    w_pre = jax.random.normal(k_wp, (num_input, num_hidden), jnp.float32) * 0.2
    b_pre = jax.random.normal(k_bp, (1, num_hidden), jnp.float32) * 0.1
    # BatchNorm1d affine params at their PyTorch defaults (gamma=1, beta=0)
    gamma = jnp.ones((num_layers, num_hidden), jnp.float32)
    beta = jnp.zeros((num_layers, num_hidden), jnp.float32)
    w_out = jax.random.normal(k_wo, (num_hidden, num_output), jnp.float32) * 0.2
    b_out = jax.random.normal(k_bo, (1, num_output), jnp.float32) * 0.1

    out = mlp_forward(x, w_pre, b_pre, gamma, beta, w_out, b_out,
                      num_layers=num_layers)
    jax.block_until_ready(out)

    ref = mlp_reference(x, w_pre, b_pre, gamma, beta, w_out, b_out,
                        num_layers=num_layers)
    assert out.shape == (N, num_output)
    assert jnp.allclose(out, ref, atol=1e-5, rtol=1e-4)

    print("KERNEL_OK")
</pallas_src>

<mosaic_0001>
module attributes {stable_mosaic.version = 11 : i64} {
  func.func @mlp_kernel(%arg0: memref<8x128xf32, #tpu.memory_space<vmem>>, %arg1: memref<128x128xf32, #tpu.memory_space<vmem>>, %arg2: memref<1x128xf32, #tpu.memory_space<vmem>>, %arg3: memref<1x128xf32, #tpu.memory_space<vmem>>, %arg4: memref<1x128xf32, #tpu.memory_space<vmem>>, %arg5: memref<128x128xf32, #tpu.memory_space<vmem>>, %arg6: memref<1x128xf32, #tpu.memory_space<vmem>>, %arg7: memref<8x128xf32, #tpu.memory_space<vmem>>) attributes {dimension_semantics = [], scalar_prefetch = 0 : i64, scratch_operands = 0 : i64, tpu.core_type = #tpu.core_type<tc>} {
    %c0 = arith.constant 0 : index
    %c0_0 = arith.constant 0 : index
    %0 = vector.load %arg0[%c0, %c0_0] : memref<8x128xf32, #tpu.memory_space<vmem>>, vector<8x128xf32>
    %c0_1 = arith.constant 0 : index
    %c0_2 = arith.constant 0 : index
    %1 = vector.load %arg1[%c0_1, %c0_2] : memref<128x128xf32, #tpu.memory_space<vmem>>, vector<128x128xf32>
    %cst = arith.constant dense<0.000000e+00> : vector<8x128xf32>
    %2 = tpu.matmul %0, %1, %cst {dimension_numbers = #tpu.dot_dimension_numbers<[1], [0], [0], [1], [0, 0, 1, 1], [], []>} : vector<8x128xf32>, vector<128x128xf32>, vector<8x128xf32> -> vector<8x128xf32>
    %c0_3 = arith.constant 0 : index
    %c0_4 = arith.constant 0 : index
    %3 = vector.load %arg2[%c0_3, %c0_4] : memref<1x128xf32, #tpu.memory_space<vmem>>, vector<1x128xf32>
    %4 = vector.broadcast %3 : vector<1x128xf32> to vector<8x128xf32>
    %5 = arith.addf %2, %4 : vector<8x128xf32>
    %cst_5 = arith.constant 5.000000e-01 : f32
    %6 = vector.broadcast %cst_5 : f32 to vector<8x128xf32>
    %7 = arith.mulf %6, %5 : vector<8x128xf32>
    %cst_6 = arith.constant 0.707106769 : f32
    %8 = vector.broadcast %cst_6 : f32 to vector<8x128xf32>
    %9 = arith.mulf %5, %8 : vector<8x128xf32>
    %10 = math.erf %9 : vector<8x128xf32>
    %cst_7 = arith.constant 1.000000e+00 : f32
    %11 = vector.broadcast %cst_7 : f32 to vector<8x128xf32>
    %12 = arith.addf %11, %10 : vector<8x128xf32>
    %13 = arith.mulf %7, %12 : vector<8x128xf32>
    %cst_8 = arith.constant dense<0.000000e+00> : vector<128xf32>
    %14 = vector.multi_reduction <add>, %13, %cst_8 [0] : vector<8x128xf32> to vector<128xf32>
    %15 = vector.shape_cast %14 : vector<128xf32> to vector<1x128xf32>
    %16 = arith.mulf %13, %13 : vector<8x128xf32>
    %cst_9 = arith.constant dense<0.000000e+00> : vector<128xf32>
    %17 = vector.multi_reduction <add>, %16, %cst_9 [0] : vector<8x128xf32> to vector<128xf32>
    %18 = vector.shape_cast %17 : vector<128xf32> to vector<1x128xf32>
    %cst_10 = arith.constant 1.250000e-01 : f32
    %19 = vector.broadcast %cst_10 : f32 to vector<1x128xf32>
    %20 = arith.mulf %15, %19 : vector<1x128xf32>
    %cst_11 = arith.constant 1.250000e-01 : f32
    %21 = vector.broadcast %cst_11 : f32 to vector<1x128xf32>
    %22 = arith.mulf %18, %21 : vector<1x128xf32>
    %23 = arith.mulf %20, %20 : vector<1x128xf32>
    %24 = arith.subf %22, %23 : vector<1x128xf32>
    %c0_12 = arith.constant 0 : index
    %c0_13 = arith.constant 0 : index
    %25 = vector.load %arg3[%c0_12, %c0_13] : memref<1x128xf32, #tpu.memory_space<vmem>>, vector<1x128xf32>
    %c0_14 = arith.constant 0 : index
    %c0_15 = arith.constant 0 : index
    %26 = vector.load %arg4[%c0_14, %c0_15] : memref<1x128xf32, #tpu.memory_space<vmem>>, vector<1x128xf32>
    %cst_16 = arith.constant 9.99999974E-6 : f32
    %27 = vector.broadcast %cst_16 : f32 to vector<1x128xf32>
    %28 = arith.addf %24, %27 : vector<1x128xf32>
    %29 = math.rsqrt %28 : vector<1x128xf32>
    %30 = arith.mulf %29, %25 : vector<1x128xf32>
    %31 = arith.mulf %20, %30 : vector<1x128xf32>
    %32 = arith.subf %26, %31 : vector<1x128xf32>
    %33 = vector.broadcast %30 : vector<1x128xf32> to vector<8x128xf32>
    %34 = arith.mulf %13, %33 : vector<8x128xf32>
    %35 = vector.broadcast %32 : vector<1x128xf32> to vector<8x128xf32>
    %36 = arith.addf %34, %35 : vector<8x128xf32>
    %cst_17 = arith.constant 5.000000e-01 : f32
    %37 = vector.broadcast %cst_17 : f32 to vector<8x128xf32>
    %38 = arith.mulf %37, %36 : vector<8x128xf32>
    %cst_18 = arith.constant 0.707106769 : f32
    %39 = vector.broadcast %cst_18 : f32 to vector<8x128xf32>
    %40 = arith.mulf %36, %39 : vector<8x128xf32>
    %41 = math.erf %40 : vector<8x128xf32>
    %cst_19 = arith.constant 1.000000e+00 : f32
    %42 = vector.broadcast %cst_19 : f32 to vector<8x128xf32>
    %43 = arith.addf %42, %41 : vector<8x128xf32>
    %44 = arith.mulf %38, %43 : vector<8x128xf32>
    %45 = arith.addf %44, %13 : vector<8x128xf32>
    %c0_20 = arith.constant 0 : index
    %c0_21 = arith.constant 0 : index
    %46 = vector.load %arg5[%c0_20, %c0_21] : memref<128x128xf32, #tpu.memory_space<vmem>>, vector<128x128xf32>
    %cst_22 = arith.constant dense<0.000000e+00> : vector<8x128xf32>
    %47 = tpu.matmul %45, %46, %cst_22 {dimension_numbers = #tpu.dot_dimension_numbers<[1], [0], [0], [1], [0, 0, 1, 1], [], []>} : vector<8x128xf32>, vector<128x128xf32>, vector<8x128xf32> -> vector<8x128xf32>
    %c0_23 = arith.constant 0 : index
    %c0_24 = arith.constant 0 : index
    %48 = vector.load %arg6[%c0_23, %c0_24] : memref<1x128xf32, #tpu.memory_space<vmem>>, vector<1x128xf32>
    %49 = vector.broadcast %48 : vector<1x128xf32> to vector<8x128xf32>
    %50 = arith.addf %47, %49 : vector<8x128xf32>
    %c0_25 = arith.constant 0 : index
    %c0_26 = arith.constant 0 : index
    %51 = vector.load %arg7[%c0_25, %c0_26] : memref<8x128xf32, #tpu.memory_space<vmem>>, vector<8x128xf32>
    tpu.vector_store %arg7[%c0_25, %c0_26], %50 {strides = array<i32>} : memref<8x128xf32, #tpu.memory_space<vmem>>, vector<8x128xf32>,
    return
  }
}

</mosaic_0001>

<llo_original>
// kernel: tpu_custom_call.1
$region0: #{tpu_custom_call.1}
  #allocation0 [shape = 'u32[]', space=smem, size = 0x4, offset = 0x4, fixed_abs, tag = 'smem constant byte address 0x4 - core index']
  #allocation1 [shape = 'u32[144,128]{1,0:T(1,128)}', space=vmem, size = 0x12000, scoped, tag = 'internal scratch']
  %s0 = inlined_call_operand.hbm [shape: f32[8,128], index: 0, kind: input, shape index: {}]
  %s1 = inlined_call_operand.hbm [shape: f32[128,128], index: 1, kind: input, shape index: {}]
  %s2 = inlined_call_operand.vmem [shape: f32[1,128], index: 2, kind: input, shape index: {}]
  %s3 = inlined_call_operand.vmem [shape: f32[1,128], index: 3, kind: input, shape index: {}]
  %s4 = inlined_call_operand.vmem [shape: f32[1,128], index: 4, kind: input, shape index: {}]
  %s5 = inlined_call_operand.hbm [shape: f32[128,128], index: 5, kind: input, shape index: {}]
  %s6 = inlined_call_operand.vmem [shape: f32[1,128], index: 6, kind: input, shape index: {}]
  %s7 = inlined_call_operand.hbm [shape: f32[8,128], index: 7, kind: output, shape index: {}]
  %s8 = sld [smem:[#allocation0]]
  $region50: #{tpu_custom_call.1} parent=0
    _
  %s10 = ssub.s32 1, %s8
  %s11 = scalar_select 0, %s10, %s8
  $region1: #{tpu_custom_call.1} parent=0
    #allocation2 [shape = 'u8[4096]{0}', space=vmem, size = 0x1000, scoped, tag = 'input window, operand 0, single buffered']
    #allocation3 [shape = 's32[1]{0}', space=sflag, size = 0x4, scoped, tag = 'scoped memory for tpu_custom_call.1']
    #allocation4 [shape = 's32[1]{0}', space=sflag, size = 0x4, scoped, tag = 'scoped memory for tpu_custom_call.1']
    #allocation5 [shape = 'u8[65536]{0}', space=vmem, size = 0x10000, scoped, tag = 'input window, operand 1, single buffered']
    #allocation6 [shape = 's32[1]{0}', space=sflag, size = 0x4, scoped, tag = 'scoped memory for tpu_custom_call.1']
    #allocation7 [shape = 'u8[65536]{0}', space=vmem, size = 0x10000, scoped, tag = 'input window, operand 5, single buffered']
    #allocation8 [shape = 'u8[4096]{0}', space=vmem, size = 0x1000, scoped, tag = 'output window, operand 0, single buffered']
    %12 = vsyncpa [#allocation3], 0
    %13 = vsyncpa [#allocation6], 0
    %14 = vsyncpa [#allocation4], 0
    // Predicated region
    $region2: #{tpu_custom_call.1} parent=1 // pred_check
      _
    $region3: #{tpu_custom_call.1} parent=1 // pred_check_branch
      %16 = sbr.rel (0) target = $region5
    $region4: #{tpu_custom_call.1} parent=1 // pred_region
      %s18 = ssub.s32 128, 128
      %19 = vsyncadd [#allocation3], %s18
      %s21 = sshll.u32 [#allocation2], 4
      %s22 = int_to_ptr.vmem [resolvable:$true] %s21
      %24 = dma.hbm_to_vmem [thread:$0]  %s0, 128, %s22, [#allocation3]
    $region5: #{tpu_custom_call.1} parent=1 // pred_fallthru
      _
    // Predicated region
    $region6: #{tpu_custom_call.1} parent=1 // pred_check
      _
    $region7: #{tpu_custom_call.1} parent=1 // pred_check_branch
      %26 = sbr.rel (0) target = $region9
    $region8: #{tpu_custom_call.1} parent=1 // pred_region
      %s28 = ssub.s32 2048, 2048
      %29 = vsyncadd [#allocation6], %s28
      %s30 = sshll.u32 [#allocation5], 4
      %s31 = int_to_ptr.vmem [resolvable:$true] %s30
      %36 = dma.hbm_to_vmem [thread:$0]  %s1, 2048, %s31, [#allocation6], 128, 128, 8
    $region9: #{tpu_custom_call.1} parent=1 // pred_fallthru
      _
    // Predicated region
    $region10: #{tpu_custom_call.1} parent=1 // pred_check
      _
    $region11: #{tpu_custom_call.1} parent=1 // pred_check_branch
      %38 = sbr.rel (0) target = $region13
    $region12: #{tpu_custom_call.1} parent=1 // pred_region
      _
    $region13: #{tpu_custom_call.1} parent=1 // pred_fallthru
      _
    // Predicated region
    $region14: #{tpu_custom_call.1} parent=1 // pred_check
      _
    $region15: #{tpu_custom_call.1} parent=1 // pred_check_branch
      %40 = sbr.rel (0) target = $region17
    $region16: #{tpu_custom_call.1} parent=1 // pred_region
      _
    $region17: #{tpu_custom_call.1} parent=1 // pred_fallthru
      _
    // Predicated region
    $region18: #{tpu_custom_call.1} parent=1 // pred_check
      _
    $region19: #{tpu_custom_call.1} parent=1 // pred_check_branch
      %42 = sbr.rel (0) target = $region21
    $region20: #{tpu_custom_call.1} parent=1 // pred_region
      _
    $region21: #{tpu_custom_call.1} parent=1 // pred_fallthru
      _
    // Predicated region
    $region22: #{tpu_custom_call.1} parent=1 // pred_check
      _
    $region23: #{tpu_custom_call.1} parent=1 // pred_check_branch
      %44 = sbr.rel (0) target = $region25
    $region24: #{tpu_custom_call.1} parent=1 // pred_region
      %s46 = ssub.s32 2048, 2048
      %47 = vsyncadd [#allocation6], %s46
      %s48 = sshll.u32 [#allocation7], 4
      %s49 = int_to_ptr.vmem [resolvable:$true] %s48
      %54 = dma.hbm_to_vmem [thread:$0]  %s5, 2048, %s49, [#allocation6], 128, 128, 8
    $region25: #{tpu_custom_call.1} parent=1 // pred_fallthru
      _
    // Predicated region
    $region26: #{tpu_custom_call.1} parent=1 // pred_check
      _
    $region27: #{tpu_custom_call.1} parent=1 // pred_check_branch
      %56 = sbr.rel (0) target = $region29
    $region28: #{tpu_custom_call.1} parent=1 // pred_region
      _
    $region29: #{tpu_custom_call.1} parent=1 // pred_fallthru
      _
    // Predicated region
    $region30: #{tpu_custom_call.1} parent=1 // pred_check
      _
    $region31: #{tpu_custom_call.1} parent=1 // pred_check_branch
      %58 = sbr.rel (0) target = $region33
    $region32: #{tpu_custom_call.1} parent=1 // pred_region
      %59 = dma.done [#allocation3], 128
    $region33: #{tpu_custom_call.1} parent=1 // pred_fallthru
      _
    // Predicated region
    $region34: #{tpu_custom_call.1} parent=1 // pred_check
      _
    $region35: #{tpu_custom_call.1} parent=1 // pred_check_branch
      %61 = sbr.rel (0) target = $region37
    $region36: #{tpu_custom_call.1} parent=1 // pred_region
      %62 = dma.done [#allocation6], 2048
    $region37: #{tpu_custom_call.1} parent=1 // pred_fallthru
      _
    // Predicated region
    $region38: #{tpu_custom_call.1} parent=1 // pred_check
      _
    $region39: #{tpu_custom_call.1} parent=1 // pred_check_branch
      %64 = sbr.rel (0) target = $region41
    $region40: #{tpu_custom_call.1} parent=1 // pred_region
      %65 = dma.done [#allocation6], 2048
    $region41: #{tpu_custom_call.1} parent=1 // pred_fallthru
      _
    %v66 = vld [vmem:[#allocation2] sm:$0xff]
    %v67 = vld [vmem:[#allocation5] sm:$0xff]
    %v68 = vld [vmem:[#allocation5 + $0x8] sm:$0xff]
    %v69 = vld [vmem:[#allocation5 + $0x10] sm:$0xff]
    %v70 = vld [vmem:[#allocation5 + $0x18] sm:$0xff]
    %v71 = vld [vmem:[#allocation5 + $0x20] sm:$0xff]
    %v72 = vld [vmem:[#allocation5 + $0x28] sm:$0xff]
    %v73 = vld [vmem:[#allocation5 + $0x30] sm:$0xff]
    %v74 = vld [vmem:[#allocation5 + $0x38] sm:$0xff]
    %v75 = vld [vmem:[#allocation5 + $0x40] sm:$0xff]
    %v76 = vld [vmem:[#allocation5 + $0x48] sm:$0xff]
    %v77 = vld [vmem:[#allocation5 + $0x50] sm:$0xff]
    %v78 = vld [vmem:[#allocation5 + $0x58] sm:$0xff]
    %v79 = vld [vmem:[#allocation5 + $0x60] sm:$0xff]
    %v80 = vld [vmem:[#allocation5 + $0x68] sm:$0xff]
    %v81 = vld [vmem:[#allocation5 + $0x70] sm:$0xff]
    %v82 = vld [vmem:[#allocation5 + $0x78] sm:$0xff]
    %v83 = vld [vmem:[%s2] sm:$0x1]
    %v85 = vlaneseq
    %v86 = vshrl.u32 %v85, 7
    %v87 = vsub.s32 0, %v86
    %v88 = vrot.slane %v83, %v87
    %90 = vmatprep.subr.mxu0 0.0
    %91 = vmatpush1.msra.mxu0 %v67
    %92 = vmatprep.subr.mxu0 0.0
    %93 = vmatpush1.msra.mxu0 %v68
    %94 = vmatprep.subr.mxu0 0.0
    %95 = vmatpush1.msra.mxu0 %v69
    %96 = vmatprep.subr.mxu0 0.0
    %97 = vmatpush1.msra.mxu0 %v70
    %98 = vmatprep.subr.mxu0 0.0
    %99 = vmatpush1.msra.mxu0 %v71
    %100 = vmatprep.subr.mxu0 0.0
    %101 = vmatpush1.msra.mxu0 %v72
    %102 = vmatprep.subr.mxu0 0.0
    %103 = vmatpush1.msra.mxu0 %v73
    %104 = vmatprep.subr.mxu0 0.0
    %105 = vmatpush1.msra.mxu0 %v74
    %106 = vmatprep.subr.mxu0 0.0
    %107 = vmatpush1.msra.mxu0 %v75
    %108 = vmatprep.subr.mxu0 0.0
    %109 = vmatpush1.msra.mxu0 %v76
    %110 = vmatprep.subr.mxu0 0.0
    %111 = vmatpush1.msra.mxu0 %v77
    %112 = vmatprep.subr.mxu0 0.0
    %113 = vmatpush1.msra.mxu0 %v78
    %114 = vmatprep.subr.mxu0 0.0
    %115 = vmatpush1.msra.mxu0 %v79
    %116 = vmatprep.subr.mxu0 0.0
    %117 = vmatpush1.msra.mxu0 %v80
    %118 = vmatprep.subr.mxu0 0.0
    %119 = vmatpush1.msra.mxu0 %v81
    %120 = vmatprep.subr.mxu0 0.0
    %121 = vmatpush1.msra.mxu0 %v82
    %122 = vmatprep.subr.mxu0 0.0
    %123 = vmatpush1.msra.mxu0 0.0
    %124 = vmatprep.subr.mxu0 0.0
    %125 = vmatpush1.msra.mxu0 0.0
    %126 = vmatprep.subr.mxu0 0.0
    %127 = vmatpush1.msra.mxu0 0.0
    %128 = vmatprep.subr.mxu0 0.0
    %129 = vmatpush1.msra.mxu0 0.0
    %130 = vmatprep.subr.mxu0 0.0
    %131 = vmatpush1.msra.mxu0 0.0
    %132 = vmatprep.subr.mxu0 0.0
    %133 = vmatpush1.msra.mxu0 0.0
    %134 = vmatprep.subr.mxu0 0.0
    %135 = vmatpush1.msra.mxu0 0.0
    %136 = vmatprep.subr.mxu0 0.0
    %137 = vmatpush1.msra.mxu0 0.0
    %138 = vmatprep.subr.mxu0 0.0
    %139 = vmatpush1.msra.mxu0 0.0
    %140 = vmatprep.subr.mxu0 0.0
    %141 = vmatpush1.msra.mxu0 0.0
    %142 = vmatprep.subr.mxu0 0.0
    %143 = vmatpush1.msra.mxu0 0.0
    %144 = vmatprep.subr.mxu0 0.0
    %145 = vmatpush1.msra.mxu0 0.0
    %146 = vmatprep.subr.mxu0 0.0
    %147 = vmatpush1.msra.mxu0 0.0
    %148 = vmatprep.subr.mxu0 0.0
    %149 = vmatpush1.msra.mxu0 0.0
    %150 = vmatprep.subr.mxu0 0.0
    %151 = vmatpush1.msra.mxu0 0.0
    %152 = vmatprep.subr.mxu0 0.0
    %153 = vmatpush1.msra.mxu0 0.0
    %154 = vmatprep.mubr.f32.mxu0 0.0
    %155 = vmatmul.mubr.f32.gmra.mrb[0].mxu0 %v66
    %v156 = vpop.f32.mrb[0].mxu0
    %v157 = vadd.f32 %v88, %v156
    %v158 = vpop.f32.mrb[0].mxu0
    %159 = vdwg.mxu0
    %v160 = vmul.f32 %v157, 0.5
    %v161 = vmul.f32 %v157, 0.70710677
    %v162 = verf.f32.pop %v161
    %v163 = vadd.f32 %v162, 1.0
    %v164 = vmul.f32 %v160, %v163
    %v165 = vrot.slane %v164, 4
    %v166 = vadd.f32 %v164, %v165
    %v167 = vrot.slane %v166, 2
    %v168 = vadd.f32 %v166, %v167
    %v169 = vrot.slane %v168, 1
    %v170 = vadd.f32 %v168, %v169
    %v171 = vmul.f32 %v164, %v164
    %v172 = vrot.slane %v171, 4
    %v173 = vadd.f32 %v171, %v172
    %v174 = vrot.slane %v173, 2
    %v175 = vadd.f32 %v173, %v174
    %v176 = vrot.slane %v175, 1
    %v177 = vadd.f32 %v175, %v176
    %v178 = vmul.f32 %v170, 0.125
    %v179 = vmul.f32 %v177, 0.125
    %v180 = vmul.f32 %v178, %v178
    %v181 = vsub.f32 %v179, %v180
    %v182 = vld [vmem:[%s3] sm:$0x1]
    %v183 = vld [vmem:[%s4] sm:$0x1]
    %v184 = vadd.f32 %v181, 1e-05
    %v185 = vrsqrt.pop %v184
    %v186 = vmul.f32 %v185, %v182
    %v187 = vmul.f32 %v178, %v186
    %v188 = vsub.f32 %v183, %v187
    %v189 = vlaneseq
    %v190 = vshrl.u32 %v189, 7
    %v191 = vsub.s32 0, %v190
    %v192 = vrot.slane %v186, %v191
    %v193 = vmul.f32 %v164, %v192
    %v195 = vlaneseq
    %v196 = vshrl.u32 %v195, 7
    %v197 = vsub.s32 0, %v196
    %v198 = vrot.slane %v188, %v197
    %v200 = vadd.f32 %v193, %v198
    %v201 = vmul.f32 %v200, 0.5
    %v202 = vmul.f32 %v200, 0.70710677
    %v203 = verf.f32.pop %v202
    %v204 = vadd.f32 %v203, 1.0
    %v205 = vmul.f32 %v201, %v204
    %v206 = vadd.f32 %v205, %v164
    %v207 = vld [vmem:[#allocation7] sm:$0xff]
    %v208 = vld [vmem:[#allocation7 + $0x8] sm:$0xff]
    %v209 = vld [vmem:[#allocation7 + $0x10] sm:$0xff]
    %v210 = vld [vmem:[#allocation7 + $0x18] sm:$0xff]
    %v211 = vld [vmem:[#allocation7 + $0x20] sm:$0xff]
    %v212 = vld [vmem:[#allocation7 + $0x28] sm:$0xff]
    %v213 = vld [vmem:[#allocation7 + $0x30] sm:$0xff]
    %v214 = vld [vmem:[#allocation7 + $0x38] sm:$0xff]
    %v215 = vld [vmem:[#allocation7 + $0x40] sm:$0xff]
    %v216 = vld [vmem:[#allocation7 + $0x48] sm:$0xff]
    %v217 = vld [vmem:[#allocation7 + $0x50] sm:$0xff]
    %v218 = vld [vmem:[#allocation7 + $0x58] sm:$0xff]
    %v219 = vld [vmem:[#allocation7 + $0x60] sm:$0xff]
    %v220 = vld [vmem:[#allocation7 + $0x68] sm:$0xff]
    %v221 = vld [vmem:[#allocation7 + $0x70] sm:$0xff]
    %v222 = vld [vmem:[#allocation7 + $0x78] sm:$0xff]
    %v223 = vld [vmem:[%s6] sm:$0x1]
    %v225 = vlaneseq
    %v226 = vshrl.u32 %v225, 7
    %v227 = vsub.s32 0, %v226
    %v228 = vrot.slane %v223, %v227
    %230 = vmatprep.subr.mxu0 0.0
    %231 = vmatpush1.msra.mxu0 %v207
    %232 = vmatprep.subr.mxu0 0.0
    %233 = vmatpush1.msra.mxu0 %v208
    %234 = vmatprep.subr.mxu0 0.0
    %235 = vmatpush1.msra.mxu0 %v209
    %236 = vmatprep.subr.mxu0 0.0
    %237 = vmatpush1.msra.mxu0 %v210
    %238 = vmatprep.subr.mxu0 0.0
    %239 = vmatpush1.msra.mxu0 %v211
    %240 = vmatprep.subr.mxu0 0.0
    %241 = vmatpush1.msra.mxu0 %v212
    %242 = vmatprep.subr.mxu0 0.0
    %243 = vmatpush1.msra.mxu0 %v213
    %244 = vmatprep.subr.mxu0 0.0
    %245 = vmatpush1.msra.mxu0 %v214
    %246 = vmatprep.subr.mxu0 0.0
    %247 = vmatpush1.msra.mxu0 %v215
    %248 = vmatprep.subr.mxu0 0.0
    %249 = vmatpush1.msra.mxu0 %v216
    %250 = vmatprep.subr.mxu0 0.0
    %251 = vmatpush1.msra.mxu0 %v217
    %252 = vmatprep.subr.mxu0 0.0
    %253 = vmatpush1.msra.mxu0 %v218
    %254 = vmatprep.subr.mxu0 0.0
    %255 = vmatpush1.msra.mxu0 %v219
    %256 = vmatprep.subr.mxu0 0.0
    %257 = vmatpush1.msra.mxu0 %v220
    %258 = vmatprep.subr.mxu0 0.0
    %259 = vmatpush1.msra.mxu0 %v221
    %260 = vmatprep.subr.mxu0 0.0
    %261 = vmatpush1.msra.mxu0 %v222
    %262 = vmatprep.subr.mxu0 0.0
    %263 = vmatpush1.msra.mxu0 0.0
    %264 = vmatprep.subr.mxu0 0.0
    %265 = vmatpush1.msra.mxu0 0.0
    %266 = vmatprep.subr.mxu0 0.0
    %267 = vmatpush1.msra.mxu0 0.0
    %268 = vmatprep.subr.mxu0 0.0
    %269 = vmatpush1.msra.mxu0 0.0
    %270 = vmatprep.subr.mxu0 0.0
    %271 = vmatpush1.msra.mxu0 0.0
    %272 = vmatprep.subr.mxu0 0.0
    %273 = vmatpush1.msra.mxu0 0.0
    %274 = vmatprep.subr.mxu0 0.0
    %275 = vmatpush1.msra.mxu0 0.0
    %276 = vmatprep.subr.mxu0 0.0
    %277 = vmatpush1.msra.mxu0 0.0
    %278 = vmatprep.subr.mxu0 0.0
    %279 = vmatpush1.msra.mxu0 0.0
    %280 = vmatprep.subr.mxu0 0.0
    %281 = vmatpush1.msra.mxu0 0.0
    %282 = vmatprep.subr.mxu0 0.0
    %283 = vmatpush1.msra.mxu0 0.0
    %284 = vmatprep.subr.mxu0 0.0
    %285 = vmatpush1.msra.mxu0 0.0
    %286 = vmatprep.subr.mxu0 0.0
    %287 = vmatpush1.msra.mxu0 0.0
    %288 = vmatprep.subr.mxu0 0.0
    %289 = vmatpush1.msra.mxu0 0.0
    %290 = vmatprep.subr.mxu0 0.0
    %291 = vmatpush1.msra.mxu0 0.0
    %292 = vmatprep.subr.mxu0 0.0
    %293 = vmatpush1.msra.mxu0 0.0
    %294 = vmatprep.mubr.f32.mxu0 0.0
    %295 = vmatmul.mubr.f32.gmra.mrb[0].mxu0 %v206
    %v296 = vpop.f32.mrb[0].mxu0
    %v297 = vadd.f32 %v228, %v296
    %v298 = vpop.f32.mrb[0].mxu0
    %299 = vdwg.mxu0
    %300 = vst [vmem:[#allocation8] sm:$0xff] %v297
    // Predicated region
    $region42: #{tpu_custom_call.1} parent=1 // pred_check
      _
    $region43: #{tpu_custom_call.1} parent=1 // pred_check_branch
      %302 = sbr.rel (0) target = $region45
    $region44: #{tpu_custom_call.1} parent=1 // pred_region
      %s304 = ssub.s32 128, 128
      %305 = vsyncadd [#allocation4], %s304
      %s307 = sshll.u32 [#allocation8], 4
      %s308 = int_to_ptr.vmem [resolvable:$true] %s307
      %310 = dma.vmem_to_hbm [thread:$0]  %s308, 128, %s7, [#allocation4]
    $region45: #{tpu_custom_call.1} parent=1 // pred_fallthru
      _
    // Predicated region
    $region46: #{tpu_custom_call.1} parent=1 // pred_check
      _
    $region47: #{tpu_custom_call.1} parent=1 // pred_check_branch
      %312 = sbr.rel (0) target = $region49
    $region48: #{tpu_custom_call.1} parent=1 // pred_region
      %313 = dma.done [#allocation4], 128
    $region49: #{tpu_custom_call.1} parent=1 // pred_fallthru
      _
    %314 = vsyncpa [#allocation3], 1
    %315 = vsyncpa [#allocation6], 1
    %316 = vsyncpa [#allocation4], 1

</llo_original>
